<compile_context>
chip_gen: v7x
topology: tpu7x:2x2x1
jax: 0.10.0
libtpu: 0.0.40
codegen_flags: <defaults>
</compile_context>

<pallas_src>
import itertools

import numpy as np
import jax
import jax.numpy as jnp
from jax.experimental import pallas as pl
from jax.experimental.pallas import tpu as pltpu


# --------------------------- tiling / compiler config ------------------------

_VMEM_LIMIT_BYTES = 48 * 1024 * 1024      # <= v7x 64 MiB physical; > default scoped on all gens
_PIPELINE_BUDGET_BYTES = 32 * 1024 * 1024  # budget for double-buffered in+out blocks
_MAX_TILE_ROWS = 4096


def _round_up(x, m):
    return ((x + m - 1) // m) * m


def _sublane(dtype):
    # sublane packing: 8 rows for 32-bit, 16 for bf16, 32 for int8
    return max(8 * 4 // jnp.dtype(dtype).itemsize, 8)


def _padded_row_bytes(trailing_dims, dtype):
    """Per-batch-row VMEM bytes of a (TB, *trailing_dims) block after Mosaic
    (sublane, lane) padding of the last two block dims."""
    item = jnp.dtype(dtype).itemsize
    dims = tuple(int(d) for d in trailing_dims)
    if len(dims) == 1:
        # (TB, W): TB is the sublane dim (TB already a multiple of 8/128 or =B),
        # W is the lane dim.
        return _round_up(dims[0], 128) * item
    lane = _round_up(dims[-1], 128)
    sub = _round_up(dims[-2], _sublane(dtype))
    lead = 1
    for d in dims[:-2]:
        lead *= d
    return lead * sub * lane * item


def _pick_batch_tile(B, row_bytes_total, max_tile=_MAX_TILE_ROWS):
    """Largest batch tile (multiple of 128) whose double-buffered padded
    working set (all in+out blocks) fits the pipeline budget."""
    per_row = 2 * max(int(row_bytes_total), 1)      # x2: double buffering
    tb = _PIPELINE_BUDGET_BYTES // per_row
    tb = max(128, min(max_tile, (tb // 128) * 128))
    if B <= tb:
        if B >= 512:
            # Split into >=2 blocks so the "parallel" grid axis can be shared
            # across v7x's two TensorCores.
            return _round_up((B + 1) // 2, 128)
        return B
    return tb


def _compiler_params():
    return pltpu.CompilerParams(
        dimension_semantics=("parallel",),           # batch tiles are independent
        vmem_limit_bytes=_VMEM_LIMIT_BYTES,
    )


# --------------------------------- kernels -----------------------------------

def _make_pool_kernel(num_fields, emb_dim, pool):
    """x2d: (TB, F*D) lane-dense -> product_sum_pooling (TB, 1) or
    Bi_interaction_pooling (TB, D).  Field reduction via per-field lane slices
    accumulated in f32 (exact, no full-tile f32 copy)."""
    D = emb_dim

    def kernel(x_ref, o_ref):
        x = x_ref[...]                                   # (TB, F*D), input dtype
        xf = x[:, 0:D].astype(jnp.float32)               # (TB, D)
        s = xf
        sq = xf * xf
        for f in range(1, num_fields):
            xf = x[:, f * D:(f + 1) * D].astype(jnp.float32)
            s = s + xf
            sq = sq + xf * xf
        bi = (s * s - sq) * 0.5                          # (TB, D) f32
        if pool == "sum":
            o_ref[...] = jnp.sum(bi, axis=-1, keepdims=True).astype(o_ref.dtype)
        else:
            o_ref[...] = bi.astype(o_ref.dtype)

    return kernel


def _make_inner_product_kernel(pairs):
    """x: (TB, F, D) -> o: (TB, P).  Each field loaded once; per-pair VPU
    multiply + lane reduce in f32; result assembled in registers and stored
    with a SINGLE store per tile (no P masked width-1 stores)."""
    def kernel(x_ref, o_ref):
        x = x_ref[...]                                   # (TB, F, D)
        num_fields = x.shape[1]
        fields = [x[:, f, :].astype(jnp.float32) for f in range(num_fields)]
        cols = [jnp.sum(fields[p] * fields[q], axis=-1, keepdims=True)
                for (p, q) in pairs]                     # P x (TB, 1)
        o_ref[...] = jnp.concatenate(cols, axis=-1).astype(o_ref.dtype)

    return kernel


def _make_elementwise_product_kernel(pairs, chunk=8):
    """x: (TB, F, D) -> o: (TB, P, D).  Pair gather fused (single HBM read of
    x); stores issued in chunks of `chunk` pairs (sublane/lane-dense) instead
    of P separate (TB, 1, D) masked stores."""
    def kernel(x_ref, o_ref):
        x = x_ref[...]                                   # (TB, F, D)
        num_fields = x.shape[1]
        fields = [x[:, f, :] for f in range(num_fields)]
        for k0 in range(0, len(pairs), chunk):
            sub = pairs[k0:k0 + chunk]
            blk = jnp.stack([fields[p] * fields[q] for (p, q) in sub], axis=1)
            o_ref[:, k0:k0 + len(sub), :] = blk.astype(o_ref.dtype)

    return kernel


# --------------------------------- wrappers ----------------------------------

def product_sum_pooling(x):
    B, F, D = x.shape
    FD = F * D
    x2d = x.reshape(B, FD)                               # free (contiguous) reshape
    item = x.dtype.itemsize
    row_bytes = _padded_row_bytes((FD,), x.dtype) + _padded_row_bytes((1,), x.dtype)
    tb = _pick_batch_tile(B, row_bytes)
    nb = pl.cdiv(B, tb)
    return pl.pallas_call(
        _make_pool_kernel(F, D, "sum"),
        out_shape=jax.ShapeDtypeStruct((B, 1), x.dtype),
        grid=(nb,),
        in_specs=[pl.BlockSpec((tb, FD), lambda b: (b, 0))],
        out_specs=pl.BlockSpec((tb, 1), lambda b: (b, 0)),
        compiler_params=_compiler_params(),
        cost_estimate=pl.CostEstimate(
            flops=5 * B * F * D,
            transcendentals=0,
            bytes_accessed=(B * FD + B) * item,
        ),
    )(x2d)


def bi_interaction_pooling(x):
    B, F, D = x.shape
    FD = F * D
    x2d = x.reshape(B, FD)
    item = x.dtype.itemsize
    row_bytes = _padded_row_bytes((FD,), x.dtype) + _padded_row_bytes((D,), x.dtype)
    tb = _pick_batch_tile(B, row_bytes)
    nb = pl.cdiv(B, tb)
    return pl.pallas_call(
        _make_pool_kernel(F, D, "bi"),
        out_shape=jax.ShapeDtypeStruct((B, D), x.dtype),
        grid=(nb,),
        in_specs=[pl.BlockSpec((tb, FD), lambda b: (b, 0))],
        out_specs=pl.BlockSpec((tb, D), lambda b: (b, 0)),
        compiler_params=_compiler_params(),
        cost_estimate=pl.CostEstimate(
            flops=5 * B * F * D,
            transcendentals=0,
            bytes_accessed=(B * FD + B * D) * item,
        ),
    )(x2d)


def inner_product(x, pairs):
    B, F, D = x.shape
    P = len(pairs)
    item = x.dtype.itemsize
    row_bytes = _padded_row_bytes((F, D), x.dtype) + _padded_row_bytes((P,), x.dtype)
    tb = _pick_batch_tile(B, row_bytes)
    nb = pl.cdiv(B, tb)
    return pl.pallas_call(
        _make_inner_product_kernel(pairs),
        out_shape=jax.ShapeDtypeStruct((B, P), x.dtype),
        grid=(nb,),
        in_specs=[pl.BlockSpec((tb, F, D), lambda b: (b, 0, 0))],
        out_specs=pl.BlockSpec((tb, P), lambda b: (b, 0)),
        compiler_params=_compiler_params(),
        cost_estimate=pl.CostEstimate(
            flops=2 * B * P * D,
            transcendentals=0,
            bytes_accessed=(B * F * D + B * P) * item,
        ),
    )(x)


def elementwise_product(x, pairs):
    B, F, D = x.shape
    P = len(pairs)
    item = x.dtype.itemsize
    row_bytes = _padded_row_bytes((F, D), x.dtype) + _padded_row_bytes((P, D), x.dtype)
    tb = _pick_batch_tile(B, row_bytes)
    nb = pl.cdiv(B, tb)
    # TODO(synk): for very large P, add a second grid axis over pair chunks so
    # the padded output block stays small in VMEM.
    return pl.pallas_call(
        _make_elementwise_product_kernel(pairs),
        out_shape=jax.ShapeDtypeStruct((B, P, D), x.dtype),
        grid=(nb,),
        in_specs=[pl.BlockSpec((tb, F, D), lambda b: (b, 0, 0))],
        out_specs=pl.BlockSpec((tb, P, D), lambda b: (b, 0, 0)),
        compiler_params=_compiler_params(),
        cost_estimate=pl.CostEstimate(
            flops=B * P * D,
            transcendentals=0,
            bytes_accessed=(B * F * D + B * P * D) * item,
        ),
    )(x)


# ------------------------------ module ports ---------------------------------

class InnerProductLayer:
    """JAX/Pallas port of rec_pangu's InnerProductLayer."""

    def __init__(self, num_fields=None, output="product_sum_pooling"):
        self._output_type = output
        if output not in [
            "product_sum_pooling",
            "Bi_interaction_pooling",
            "inner_product",
            "elementwise_product",
        ]:
            raise ValueError(
                "InnerProductLayer output={} is not supported.".format(output))
        if num_fields is None:
            if output in ["inner_product", "elementwise_product"]:
                raise ValueError(
                    "num_fields is required when InnerProductLayer "
                    "output={}.".format(output))
            self._pairs = None
            self.interaction_units = None
        else:
            # combinations(range(F), 2) order == row-major upper-triangle order,
            # matching torch.masked_select over triu(ones, 1).
            self._pairs = list(itertools.combinations(range(num_fields), 2))
            self.interaction_units = num_fields * (num_fields - 1) // 2

    def __call__(self, feature_emb):
        if self._output_type == "product_sum_pooling":
            return product_sum_pooling(feature_emb)
        if self._output_type == "Bi_interaction_pooling":
            return bi_interaction_pooling(feature_emb)
        if self._output_type == "inner_product":
            return inner_product(feature_emb, self._pairs)
        return elementwise_product(feature_emb, self._pairs)


class FM_Layer:
    """JAX/Pallas port of rec_pangu's FM_Layer (product_sum_pooling + activation)."""

    def __init__(self, final_activation=None, use_bias=True):
        self.inner_product_layer = InnerProductLayer(output="product_sum_pooling")
        self.final_activation = final_activation   # applied outside the kernel

    def __call__(self, feature_emb_list):
        output = self.inner_product_layer(feature_emb_list)
        if self.final_activation is not None:
            output = self.final_activation(output)
        return output


# -------------------------------- reference ----------------------------------

def _ref_inner_product_layer(x, num_fields, output):
    # Pure-f32 elementwise/sum reference (avoids TPU default reduced-precision
    # matmuls so tolerances stay tight).
    if output in ("product_sum_pooling", "Bi_interaction_pooling"):
        sos = jnp.sum(x, axis=1) ** 2
        sqs = jnp.sum(x * x, axis=1)
        bi = (sos - sqs) * 0.5
        if output == "Bi_interaction_pooling":
            return bi
        return jnp.sum(bi, axis=-1, keepdims=True)
    pairs = list(itertools.combinations(range(num_fields), 2))
    p = np.asarray([pp for pp, _ in pairs])
    q = np.asarray([qq for _, qq in pairs])
    emb1 = x[:, p, :]
    emb2 = x[:, q, :]
    if output == "elementwise_product":
        return emb1 * emb2
    return jnp.sum(emb1 * emb2, axis=-1)


# ----------------------------------- main -------------------------------------

if __name__ == "__main__":
    key = jax.random.PRNGKey(0)
    B, F, D = 2, 4, 32
    feature_emb = jax.random.normal(key, (B, F, D), dtype=jnp.float32)

    ok = True

    # FM_Layer (the module under test)
    fm = FM_Layer()
    out = jax.block_until_ready(fm(feature_emb))
    ref = jax.block_until_ready(
        _ref_inner_product_layer(feature_emb, F, "product_sum_pooling"))
    if out.shape != ref.shape or not np.allclose(
            np.asarray(out), np.asarray(ref), rtol=1e-5, atol=1e-5):
        ok = False
        print("MISMATCH in FM_Layer")

    # All InnerProductLayer modes
    for mode in [
        "product_sum_pooling",
        "Bi_interaction_pooling",
        "inner_product",
        "elementwise_product",
    ]:
        layer = InnerProductLayer(num_fields=F, output=mode)
        out = jax.block_until_ready(layer(feature_emb))
        ref = jax.block_until_ready(_ref_inner_product_layer(feature_emb, F, mode))
        if out.shape != ref.shape or not np.allclose(
                np.asarray(out), np.asarray(ref), rtol=1e-5, atol=1e-5):
            ok = False
            print(f"MISMATCH in mode {mode}")

    if ok:
        print("KERNEL_OK")
</pallas_src>

<mosaic_0001>
module attributes {stable_mosaic.version = 11 : i64} {
  func.func @kernel(%arg0: i32, %arg1: memref<2x128xf32, #tpu.memory_space<vmem>>, %arg2: memref<2x1xf32, #tpu.memory_space<vmem>>) attributes {dimension_semantics = [#tpu.dimension_semantics<parallel>], iteration_bounds = array<i64: 1>, scalar_prefetch = 0 : i64, scratch_operands = 0 : i64, tpu.core_type = #tpu.core_type<tc>, window_params = [{transform_indices = @transform_0, window_bounds = array<i64: 2, 128>}, {transform_indices = @transform_1, window_bounds = array<i64: 2, 1>}]} {
    %c0 = arith.constant 0 : index
    %c0_0 = arith.constant 0 : index
    %0 = vector.load %arg1[%c0, %c0_0] : memref<2x128xf32, #tpu.memory_space<vmem>>, vector<2x128xf32>
    %1 = vector.extract_strided_slice %0 {offsets = [0, 0], sizes = [2, 32], strides = [1, 1]} : vector<2x128xf32> to vector<2x32xf32>
    %2 = arith.mulf %1, %1 : vector<2x32xf32>
    %3 = vector.extract_strided_slice %0 {offsets = [0, 32], sizes = [2, 32], strides = [1, 1]} : vector<2x128xf32> to vector<2x32xf32>
    %4 = arith.addf %1, %3 : vector<2x32xf32>
    %5 = arith.mulf %3, %3 : vector<2x32xf32>
    %6 = arith.addf %2, %5 : vector<2x32xf32>
    %7 = vector.extract_strided_slice %0 {offsets = [0, 64], sizes = [2, 32], strides = [1, 1]} : vector<2x128xf32> to vector<2x32xf32>
    %8 = arith.addf %4, %7 : vector<2x32xf32>
    %9 = arith.mulf %7, %7 : vector<2x32xf32>
    %10 = arith.addf %6, %9 : vector<2x32xf32>
    %11 = vector.extract_strided_slice %0 {offsets = [0, 96], sizes = [2, 32], strides = [1, 1]} : vector<2x128xf32> to vector<2x32xf32>
    %12 = arith.addf %8, %11 : vector<2x32xf32>
    %13 = arith.mulf %11, %11 : vector<2x32xf32>
    %14 = arith.addf %10, %13 : vector<2x32xf32>
    %15 = arith.mulf %12, %12 : vector<2x32xf32>
    %16 = arith.subf %15, %14 : vector<2x32xf32>
    %cst = arith.constant 5.000000e-01 : f32
    %17 = vector.broadcast %cst : f32 to vector<2x32xf32>
    %18 = arith.mulf %16, %17 : vector<2x32xf32>
    %cst_1 = arith.constant dense<0.000000e+00> : vector<2xf32>
    %19 = vector.multi_reduction <add>, %18, %cst_1 [1] : vector<2x32xf32> to vector<2xf32>
    %20 = vector.shape_cast %19 : vector<2xf32> to vector<2x1xf32>
    %c0_2 = arith.constant 0 : index
    %c0_3 = arith.constant 0 : index
    %21 = vector.load %arg2[%c0_2, %c0_3] : memref<2x1xf32, #tpu.memory_space<vmem>>, vector<2x1xf32>
    tpu.vector_store %arg2[%c0_2, %c0_3], %20 {strides = array<i32>} : memref<2x1xf32, #tpu.memory_space<vmem>>, vector<2x1xf32>,
    return
  }
  func.func @transform_0(%arg0: i32) -> (i32, i32) {
    %c0_i32 = arith.constant 0 : i32
    %c0_i32_0 = arith.constant 0 : i32
    return %arg0, %c0_i32 : i32, i32
  }
  func.func @transform_1(%arg0: i32) -> (i32, i32) {
    %c0_i32 = arith.constant 0 : i32
    %c0_i32_0 = arith.constant 0 : i32
    return %arg0, %c0_i32 : i32, i32
  }
}

</mosaic_0001>

<llo_original>
// kernel: tpu_custom_call.1
$region0: #{tpu_custom_call.1}
  #allocation0 [shape = 'u32[]', space=smem, size = 0x4, offset = 0x4, fixed_abs, tag = 'smem constant byte address 0x4 - core index']
  #allocation1 [shape = 'u32[144,128]{1,0:T(1,128)}', space=vmem, size = 0x12000, scoped, tag = 'internal scratch']
  %s0 = inlined_call_operand.hbm [shape: f32[2,128], index: 0, kind: input, shape index: {}]
  %s1 = inlined_call_operand.vmem [shape: f32[2,1], index: 1, kind: output, shape index: {}]
  %s2 = sld [smem:[#allocation0]]
  $region18: #{tpu_custom_call.1} parent=0
    _
  %s4 = ssub.s32 1, %s2
  %s5 = scalar_select 0, %s4, %s2
  $region1: #{tpu_custom_call.1} parent=0
    #allocation2 [shape = 'u8[1024]{0}', space=vmem, size = 0x400, scoped, tag = 'input window, operand 0, single buffered']
    #allocation3 [shape = 's32[1]{0}', space=sflag, size = 0x4, scoped, tag = 'scoped memory for tpu_custom_call.1']
    %6 = vsyncpa [#allocation3], 0
    // Predicated region
    $region2: #{tpu_custom_call.1} parent=1 // pred_check
      _
    $region3: #{tpu_custom_call.1} parent=1 // pred_check_branch
      %8 = sbr.rel (0) target = $region5
    $region4: #{tpu_custom_call.1} parent=1 // pred_region
      %s10 = ssub.s32 32, 32
      %11 = vsyncadd [#allocation3], %s10
      %s13 = sshll.u32 [#allocation2], 4
      %s14 = int_to_ptr.vmem [resolvable:$true] %s13
      %16 = dma.hbm_to_vmem [thread:$0]  %s0, 32, %s14, [#allocation3]
    $region5: #{tpu_custom_call.1} parent=1 // pred_fallthru
      _
    // Predicated region
    $region6: #{tpu_custom_call.1} parent=1 // pred_check
      _
    $region7: #{tpu_custom_call.1} parent=1 // pred_check_branch
      %18 = sbr.rel (0) target = $region9
    $region8: #{tpu_custom_call.1} parent=1 // pred_region
      %19 = dma.done [#allocation3], 32
    $region9: #{tpu_custom_call.1} parent=1 // pred_fallthru
      _
    %v20 = vld [vmem:[#allocation2] sm:$0x3]
    %v21 = vmul.f32 %v20, %v20
    %23 = vrot.lane.b32.xlu0 %v20, 96
    %v24 = vpop.permute.xlu0 %23
    %v26 = vadd.f32 %v20, %v24
    %28 = vrot.lane.b32.xlu0 %v21, 96
    %v29 = vpop.permute.xlu0 %28
    %v31 = vadd.f32 %v21, %v29
    %32 = vrot.lane.b32.xlu0 %v20, 64
    %v33 = vpop.permute.xlu0 %32
    %v35 = vadd.f32 %v26, %v33
    %36 = vrot.lane.b32.xlu0 %v21, 64
    %v37 = vpop.permute.xlu0 %36
    %v39 = vadd.f32 %v31, %v37
    %40 = vrot.lane.b32.xlu0 %v20, 32
    %v41 = vpop.permute.xlu0 %40
    %v43 = vadd.f32 %v35, %v41
    %44 = vrot.lane.b32.xlu0 %v21, 32
    %v45 = vpop.permute.xlu0 %44
    %v47 = vadd.f32 %v39, %v45
    %v48 = vmul.f32 %v43, %v43
    %v49 = vsub.f32 %v48, %v47
    %v50 = vmul.f32 %v49, 0.5
    %vm51 = vcmask 254976
    %v52 = vsel %vm51, %v50, 0.0
    %53 = vadd.xlane.f32.xlu0 %v52
    %v54 = vpop.xlane.xlu0 %53
    %vm55 = vcmask 1024
    %56 = vst.msk [vmem:[%s1] sm:$0x3] %vm55, %v54
    // Predicated region
    $region10: #{tpu_custom_call.1} parent=1 // pred_check
      _
    $region11: #{tpu_custom_call.1} parent=1 // pred_check_branch
      %58 = sbr.rel (0) target = $region13
    $region12: #{tpu_custom_call.1} parent=1 // pred_region
      _
    $region13: #{tpu_custom_call.1} parent=1 // pred_fallthru
      _
    // Predicated region
    $region14: #{tpu_custom_call.1} parent=1 // pred_check
      _
    $region15: #{tpu_custom_call.1} parent=1 // pred_check_branch
      %60 = sbr.rel (0) target = $region17
    $region16: #{tpu_custom_call.1} parent=1 // pred_region
      _
    $region17: #{tpu_custom_call.1} parent=1 // pred_fallthru
      _
    %61 = vsyncpa [#allocation3], 1

</llo_original>
